<compile_context>
chip_gen: v6e
topology: v6e:2x2x1
jax: 0.10.0
libtpu: 0.0.40
codegen_flags: <defaults>
</compile_context>

<pallas_src>
import jax
import jax.numpy as jnp
from jax.experimental import pallas as pl
from jax.experimental.pallas import tpu as pltpu


# ---------------------------------------------------------------------------
# Kernel
# ---------------------------------------------------------------------------
def _attention_kernel(x_ref, w1_ref, b1_ref, w2_ref, mask_ref, out_ref):
    """One batch tile of AttentionLayer.

    x_ref:    (TB*S, D)  f32   flattened (batch, seq) rows of the input
    w1_ref:   (D, H)     f32   first Linear weight (transposed from torch)
    b1_ref:   (1, H)     f32   first Linear bias
    w2_ref:   (1, H)     f32   second Linear weight as a row vector
    mask_ref: (TB, S)    f32   1.0 = keep, 0.0 = masked
    out_ref:  (TB, S)    f32   softmax weights over the sequence axis
    """
    tb, s = out_ref.shape

    # hidden = tanh(x @ W1 + b1): single 2-D MXU matmul (M = TB*S).
    # The bf16 cast happens in vregs (no extra HBM traffic); accumulate f32.
    x_bf = x_ref[...].astype(jnp.bfloat16)
    w_bf = w1_ref[...].astype(jnp.bfloat16)
    h = jnp.dot(x_bf, w_bf, preferred_element_type=jnp.float32)
    h = jnp.tanh(h + b1_ref[...])                        # (TB*S, H) f32

    # scores = h @ w2 done as VPU mul + XLU lane reduce (avoids an N=1 matvec).
    # The reshape only splits the leading dim (layout-preserving, H stays in lanes).
    h3 = h.reshape(tb, s, h.shape[-1])                   # (TB, S, H)
    w2 = w2_ref[...].reshape(1, 1, -1)                   # (1, 1, H)
    scores = jnp.sum(h3 * w2, axis=-1)                   # (TB, S)
    # NOTE: the second Linear's bias is dropped -- softmax over S is invariant
    # to a constant added to every position.

    # Masked softmax over the sequence (last / lane) axis.
    mask = mask_ref[...]
    keep = (mask > 0).astype(jnp.float32)
    logits = jnp.where(mask > 0, scores, jnp.full_like(scores, -1e30))
    m = jnp.max(logits, axis=-1, keepdims=True)
    e = jnp.exp(logits - m) * keep
    denom = jnp.maximum(jnp.sum(e, axis=-1, keepdims=True), 1e-30)  # guard all-masked rows
    r = pl.reciprocal(denom, approx=True)                # EUP vrcp
    r = r * (2.0 - denom * r)                            # one Newton step -> ~exact
    out_ref[...] = e * r


# ---------------------------------------------------------------------------
# Tiling / VMEM budgeting
# ---------------------------------------------------------------------------
def _vmem_capacity_bytes():
    try:
        return int(pltpu.get_tpu_info().vmem_capacity_bytes)
    except Exception:
        return 128 << 20  # conservative default (v5e / v6e physical VMEM)


def _est_vmem_bytes(tb, S, D, H, single_buffer_weights=True):
    """Honest per-step working-set estimate for one batch tile."""
    xb = 2 * tb * S * D * 4                     # f32 x tile, double-buffered
    wb = (1 if single_buffer_weights else 2) * D * H * 4 + 4 * H * 4  # w1 + b1/w2
    mo = 2 * (tb * S * 4) * 2                   # mask + out tiles, double-buffered
    hb = tb * S * H * 4                         # f32 hidden h
    pb = tb * S * H * 4                         # (TB,S,H) score-product temporary
    cb = tb * S * D * 2 + D * H * 2             # in-kernel bf16 copies of x tile / w1
    return xb + wb + mo + hb + pb + cb


def _pick_batch_tile(B, S, D, H, budget_bytes, min_steps=4):
    """Largest batch tile TB that (a) divides B, (b) keeps the (TB,S) blocks
    legal (TB % 8 == 0 or TB == B), (c) fits the VMEM budget, preferring
    candidates that leave >= min_steps grid steps (even step count first) so
    the pipeline overlaps and v7x megacore sharding has work to split."""
    cands = [tb for tb in range(1, B + 1)
             if B % tb == 0 and (tb % 8 == 0 or tb == B)]
    fitting = [tb for tb in cands if _est_vmem_bytes(tb, S, D, H) <= budget_bytes]
    for pred in (lambda tb: (B // tb) >= min_steps and (B // tb) % 2 == 0,
                 lambda tb: (B // tb) >= min_steps,
                 lambda tb: True):
        sel = [tb for tb in fitting if pred(tb)]
        if sel:
            return max(sel)
    return min(cands)   # nothing fits the budget: smallest legal tile
                        # (vmem_limit_bytes is raised to cover it in the wrapper)


# ---------------------------------------------------------------------------
# pallas_call builder + public wrapper
# ---------------------------------------------------------------------------
def _build_call(B, S, D, H, TB, vmem_limit_bytes, single_buffer_weights):
    grid = (B // TB,)

    def const_spec(shape):
        # Constant-index inputs: request single buffering (they never change
        # across grid steps), falling back to default buffering if the running
        # JAX version does not support pipeline_mode / Buffered(1).
        if single_buffer_weights:
            try:
                return pl.BlockSpec(shape, lambda b: (0, 0),
                                    pipeline_mode=pl.Buffered(1))
            except Exception:
                pass
        return pl.BlockSpec(shape, lambda b: (0, 0))

    cost = pl.CostEstimate(
        flops=2 * B * S * D * H + 2 * B * S * H + 6 * B * S,
        transcendentals=B * S * H + B * S,
        bytes_accessed=B * S * D * 4 + D * H * 4 + 2 * H * 4 + 2 * B * S * 4,
    )

    return pl.pallas_call(
        _attention_kernel,
        out_shape=jax.ShapeDtypeStruct((B, S), jnp.float32),
        grid=grid,
        in_specs=[
            pl.BlockSpec((TB * S, D), lambda b: (b, 0)),   # x rows: streamed
            const_spec((D, H)),                            # weights: VMEM-resident
            const_spec((1, H)),
            const_spec((1, H)),
            pl.BlockSpec((TB, S), lambda b: (b, 0)),       # mask
        ],
        out_specs=pl.BlockSpec((TB, S), lambda b: (b, 0)),
        compiler_params=pltpu.CompilerParams(
            dimension_semantics=("parallel",),             # shard batch across TCs
            vmem_limit_bytes=int(vmem_limit_bytes),
        ),
        cost_estimate=cost,
    )


def attention_layer(x, w1, b1, w2, b2=None, mask=None):
    """Pallas TPU forward of AttentionLayer.

    x: (B,S,D), w1: (D,H), b1: (H,), w2: (H,1), b2: (1,) [unused], mask: (B,S).
    Returns (B, S) attention weights (masked positions get exactly zero weight).
    """
    del b2  # adding a constant to every logit does not change the softmax
    B, S, D = x.shape
    H = w1.shape[1]
    if mask is None:
        mask = jnp.ones((B, S), dtype=jnp.float32)

    cap = _vmem_capacity_bytes()
    # Generation-aware budget: ~70% of physical VMEM on v7x (64 MiB -> ~45 MiB),
    # capped at 64 MiB scoped on v5e/v6e (128 MiB physical).
    budget = min(int(cap * 0.7), 64 << 20)
    TB = _pick_batch_tile(B, S, D, H, budget)
    est = _est_vmem_bytes(TB, S, D, H)
    vmem_limit = min(cap, max(budget, est + est // 4 + (1 << 20)))

    # No dtype change on the dominant x stream; reshape is metadata-only.
    x2d = x.reshape(B * S, D).astype(jnp.float32)
    w1 = w1.astype(jnp.float32)
    b1 = b1.reshape(1, H).astype(jnp.float32)
    w2row = w2.reshape(1, H).astype(jnp.float32)
    mask = mask.astype(jnp.float32)
    args = (x2d, w1, b1, w2row, mask)

    try:
        return _build_call(B, S, D, H, TB, vmem_limit, True)(*args)
    except Exception:
        # Buffered(1) not supported by this JAX/Mosaic build: default buffering.
        return _build_call(B, S, D, H, TB, vmem_limit, False)(*args)


# ---------------------------------------------------------------------------
# Pure-JAX reference
# ---------------------------------------------------------------------------
def attention_layer_ref(x, w1, b1, w2, b2, mask, *, matmul_dtype=jnp.float32):
    """Pure-JAX reference (matmul input dtype selectable for comparison)."""
    h = jnp.tanh(
        jnp.einsum("bsd,dh->bsh", x.astype(matmul_dtype), w1.astype(matmul_dtype),
                   preferred_element_type=jnp.float32) + b1)
    scores = jnp.einsum("bsh,ho->bso", h, w2.astype(jnp.float32))[..., 0] + b2[0]
    keep = (mask > 0).astype(jnp.float32)
    logits = jnp.where(mask > 0, scores, -1e30)
    e = jnp.exp(logits - jnp.max(logits, axis=-1, keepdims=True)) * keep
    return e / jnp.sum(e, axis=-1, keepdims=True)


if __name__ == "__main__":
    B, S, D, H = 2, 8, 32, 32
    key = jax.random.PRNGKey(0)
    kx, k1, kb1, k2, kb2 = jax.random.split(key, 5)

    x = jax.random.normal(kx, (B, S, D), dtype=jnp.float32)
    # PyTorch Linear weight is (out, in); we store the transposed (in, out) form.
    w1 = jax.random.normal(k1, (D, H), dtype=jnp.float32) * (1.0 / jnp.sqrt(D))
    b1 = jax.random.normal(kb1, (H,), dtype=jnp.float32) * 0.1
    w2 = jax.random.normal(k2, (H, 1), dtype=jnp.float32) * (1.0 / jnp.sqrt(H))
    b2 = jax.random.normal(kb2, (1,), dtype=jnp.float32) * 0.1

    # mask: last 2 positions of batch 1 masked out; batch 0 fully visible.
    mask = jnp.ones((B, S), dtype=jnp.float32).at[1, -2:].set(0.0)

    out = attention_layer(x, w1, b1, w2, b2, mask)
    out = jax.block_until_ready(out)
    assert out.shape == (B, S)

    # Reference with the same (bf16 matmul-input, f32 accum) numerics as the kernel.
    ref_bf16 = attention_layer_ref(x, w1, b1, w2, b2, mask,
                                   matmul_dtype=jnp.bfloat16)
    assert jnp.allclose(out, ref_bf16, atol=1e-4, rtol=1e-4), \
        float(jnp.max(jnp.abs(out - ref_bf16)))

    # Full-f32 module semantics (loose tolerance covers the bf16 matmul inputs).
    ref_f32 = attention_layer_ref(x, w1, b1, w2, b2, mask,
                                  matmul_dtype=jnp.float32)
    assert jnp.allclose(out, ref_f32, atol=5e-2, rtol=5e-2)

    # Rows are proper distributions; masked positions get exactly zero weight.
    assert jnp.allclose(jnp.sum(out, axis=-1), jnp.ones((B,)), atol=1e-4)
    assert jnp.allclose(out[1, -2:], jnp.zeros((2,)), atol=1e-12)

    print("KERNEL_OK")
</pallas_src>

<mosaic_0001>
module attributes {stable_mosaic.version = 11 : i64} {
  func.func @_attention_kernel(%arg0: i32, %arg1: memref<16x32xf32, #tpu.memory_space<vmem>>, %arg2: memref<32x32xf32, #tpu.memory_space<vmem>>, %arg3: memref<1x32xf32, #tpu.memory_space<vmem>>, %arg4: memref<1x32xf32, #tpu.memory_space<vmem>>, %arg5: memref<2x8xf32, #tpu.memory_space<vmem>>, %arg6: memref<2x8xf32, #tpu.memory_space<vmem>>) attributes {dimension_semantics = [#tpu.dimension_semantics<parallel>], iteration_bounds = array<i64: 1>, scalar_prefetch = 0 : i64, scratch_operands = 0 : i64, tpu.core_type = #tpu.core_type<tc>, window_params = [{transform_indices = @transform_0, window_bounds = array<i64: 16, 32>}, {pipeline_mode = #tpu.pipeline_mode<synchronous>, transform_indices = @transform_1, window_bounds = array<i64: 32, 32>}, {pipeline_mode = #tpu.pipeline_mode<synchronous>, transform_indices = @transform_2, window_bounds = array<i64: 1, 32>}, {pipeline_mode = #tpu.pipeline_mode<synchronous>, transform_indices = @transform_3, window_bounds = array<i64: 1, 32>}, {transform_indices = @transform_4, window_bounds = array<i64: 2, 8>}, {transform_indices = @transform_5, window_bounds = array<i64: 2, 8>}]} {
    %c0 = arith.constant 0 : index
    %c0_0 = arith.constant 0 : index
    %0 = vector.load %arg1[%c0, %c0_0] : memref<16x32xf32, #tpu.memory_space<vmem>>, vector<16x32xf32>
    %1 = arith.truncf %0 : vector<16x32xf32> to vector<16x32xbf16>
    %c0_1 = arith.constant 0 : index
    %c0_2 = arith.constant 0 : index
    %2 = vector.load %arg2[%c0_1, %c0_2] : memref<32x32xf32, #tpu.memory_space<vmem>>, vector<32x32xf32>
    %3 = arith.truncf %2 : vector<32x32xf32> to vector<32x32xbf16>
    %cst = arith.constant dense<0.000000e+00> : vector<16x32xf32>
    %4 = tpu.matmul %1, %3, %cst {dimension_numbers = #tpu.dot_dimension_numbers<[1], [0], [0], [1], [0, 0, 1, 1], [], []>} : vector<16x32xbf16>, vector<32x32xbf16>, vector<16x32xf32> -> vector<16x32xf32>
    %c0_3 = arith.constant 0 : index
    %c0_4 = arith.constant 0 : index
    %5 = vector.load %arg3[%c0_3, %c0_4] : memref<1x32xf32, #tpu.memory_space<vmem>>, vector<1x32xf32>
    %6 = vector.broadcast %5 : vector<1x32xf32> to vector<16x32xf32>
    %7 = arith.addf %4, %6 : vector<16x32xf32>
    %8 = math.tanh %7 : vector<16x32xf32>
    %9 = vector.shape_cast %8 : vector<16x32xf32> to vector<2x8x32xf32>
    %c0_5 = arith.constant 0 : index
    %c0_6 = arith.constant 0 : index
    %10 = vector.load %arg4[%c0_5, %c0_6] : memref<1x32xf32, #tpu.memory_space<vmem>>, vector<1x32xf32>
    %11 = vector.shape_cast %10 : vector<1x32xf32> to vector<1x1x32xf32>
    %12 = vector.broadcast %11 : vector<1x1x32xf32> to vector<2x8x32xf32>
    %13 = arith.mulf %9, %12 : vector<2x8x32xf32>
    %cst_7 = arith.constant dense<0.000000e+00> : vector<2x8xf32>
    %14 = vector.multi_reduction <add>, %13, %cst_7 [2] : vector<2x8x32xf32> to vector<2x8xf32>
    %c0_8 = arith.constant 0 : index
    %c0_9 = arith.constant 0 : index
    %15 = vector.load %arg5[%c0_8, %c0_9] : memref<2x8xf32, #tpu.memory_space<vmem>>, vector<2x8xf32>
    %cst_10 = arith.constant 0.000000e+00 : f32
    %16 = vector.broadcast %cst_10 : f32 to vector<2x8xf32>
    %17 = arith.cmpf ogt, %15, %16 : vector<2x8xf32>
    %18 = arith.extui %17 : vector<2x8xi1> to vector<2x8xi32>
    %19 = arith.sitofp %18 : vector<2x8xi32> to vector<2x8xf32>
    %cst_11 = arith.constant 0.000000e+00 : f32
    %20 = vector.broadcast %cst_11 : f32 to vector<2x8xf32>
    %21 = arith.cmpf ogt, %15, %20 : vector<2x8xf32>
    %cst_12 = arith.constant -1.000000e+30 : f32
    %22 = vector.broadcast %cst_12 : f32 to vector<2x8xf32>
    %23 = arith.select %21, %14, %22 : vector<2x8xi1>, vector<2x8xf32>
    %cst_13 = arith.constant dense<0xFF800000> : vector<2xf32>
    %24 = vector.multi_reduction <maximumf>, %23, %cst_13 [1] : vector<2x8xf32> to vector<2xf32>
    %25 = vector.shape_cast %24 : vector<2xf32> to vector<2x1xf32>
    %26 = vector.broadcast %25 : vector<2x1xf32> to vector<2x8xf32>
    %27 = arith.subf %23, %26 : vector<2x8xf32>
    %28 = math.exp %27 : vector<2x8xf32>
    %29 = arith.mulf %28, %19 : vector<2x8xf32>
    %cst_14 = arith.constant dense<0.000000e+00> : vector<2xf32>
    %30 = vector.multi_reduction <add>, %29, %cst_14 [1] : vector<2x8xf32> to vector<2xf32>
    %31 = vector.shape_cast %30 : vector<2xf32> to vector<2x1xf32>
    %cst_15 = arith.constant 1.000000e-30 : f32
    %32 = vector.broadcast %cst_15 : f32 to vector<2x1xf32>
    %33 = arith.maximumf %31, %32 : vector<2x1xf32>
    %34 = tpu.reciprocal %33 {approx = true} : vector<2x1xf32> -> vector<2x1xf32>
    %35 = arith.mulf %33, %34 : vector<2x1xf32>
    %cst_16 = arith.constant 2.000000e+00 : f32
    %36 = vector.broadcast %cst_16 : f32 to vector<2x1xf32>
    %37 = arith.subf %36, %35 : vector<2x1xf32>
    %38 = arith.mulf %34, %37 : vector<2x1xf32>
    %39 = vector.broadcast %38 : vector<2x1xf32> to vector<2x8xf32>
    %40 = arith.mulf %29, %39 : vector<2x8xf32>
    %c0_17 = arith.constant 0 : index
    %c0_18 = arith.constant 0 : index
    %41 = vector.load %arg6[%c0_17, %c0_18] : memref<2x8xf32, #tpu.memory_space<vmem>>, vector<2x8xf32>
    tpu.vector_store %arg6[%c0_17, %c0_18], %40 {strides = array<i32>} : memref<2x8xf32, #tpu.memory_space<vmem>>, vector<2x8xf32>,
    return
  }
  func.func @transform_0(%arg0: i32) -> (i32, i32) {
    %c0_i32 = arith.constant 0 : i32
    %c0_i32_0 = arith.constant 0 : i32
    return %arg0, %c0_i32 : i32, i32
  }
  func.func @transform_1(%arg0: i32) -> (i32, i32) {
    %c0_i32 = arith.constant 0 : i32
    %c0_i32_0 = arith.constant 0 : i32
    %c0_i32_1 = arith.constant 0 : i32
    return %c0_i32, %c0_i32_0 : i32, i32
  }
  func.func @transform_2(%arg0: i32) -> (i32, i32) {
    %c0_i32 = arith.constant 0 : i32
    %c0_i32_0 = arith.constant 0 : i32
    %c0_i32_1 = arith.constant 0 : i32
    return %c0_i32, %c0_i32_0 : i32, i32
  }
  func.func @transform_3(%arg0: i32) -> (i32, i32) {
    %c0_i32 = arith.constant 0 : i32
    %c0_i32_0 = arith.constant 0 : i32
    %c0_i32_1 = arith.constant 0 : i32
    return %c0_i32, %c0_i32_0 : i32, i32
  }
  func.func @transform_4(%arg0: i32) -> (i32, i32) {
    %c0_i32 = arith.constant 0 : i32
    %c0_i32_0 = arith.constant 0 : i32
    return %arg0, %c0_i32 : i32, i32
  }
  func.func @transform_5(%arg0: i32) -> (i32, i32) {
    %c0_i32 = arith.constant 0 : i32
    %c0_i32_0 = arith.constant 0 : i32
    return %arg0, %c0_i32 : i32, i32
  }
}

module attributes {stable_mosaic.version = 11 : i64} {
  func.func @_attention_kernel(%arg0: i32, %arg1: memref<16x32xf32, #tpu.memory_space<vmem>>, %arg2: memref<32x32xf32, #tpu.memory_space<vmem>>, %arg3: memref<1x32xf32, #tpu.memory_space<vmem>>, %arg4: memref<1x32xf32, #tpu.memory_space<vmem>>, %arg5: memref<2x8xf32, #tpu.memory_space<vmem>>, %arg6: memref<2x8xf32, #tpu.memory_space<vmem>>) attributes {dimension_semantics = [#tpu.dimension_semantics<parallel>], iteration_bounds = array<i64: 1>, scalar_prefetch = 0 : i64, scratch_operands = 0 : i64, tpu.core_type = #tpu.core_type<tc>, window_params = [{transform_indices = @transform_0, window_bounds = array<i64: 16, 32>}, {pipeline_mode = #tpu.pipeline_mode<synchronous>, transform_indices = @transform_1, window_bounds = array<i64: 32, 32>}, {pipeline_mode = #tpu.pipeline_mode<synchronous>, transform_indices = @transform_2, window_bounds = array<i64: 1, 32>}, {pipeline_mode = #tpu.pipeline_mode<synchronous>, transform_indices = @transform_3, window_bounds = array<i64: 1, 32>}, {transform_indices = @transform_4, window_bounds = array<i64: 2, 8>}, {transform_indices = @transform_5, window_bounds = array<i64: 2, 8>}]} {
    %c0 = arith.constant 0 : index
    %c0_0 = arith.constant 0 : index
    %0 = vector.load %arg1[%c0, %c0_0] : memref<16x32xf32, #tpu.memory_space<vmem>>, vector<16x32xf32>
    %1 = arith.truncf %0 : vector<16x32xf32> to vector<16x32xbf16>
    %c0_1 = arith.constant 0 : index
    %c0_2 = arith.constant 0 : index
    %2 = vector.load %arg2[%c0_1, %c0_2] : memref<32x32xf32, #tpu.memory_space<vmem>>, vector<32x32xf32>
    %3 = arith.truncf %2 : vector<32x32xf32> to vector<32x32xbf16>
    %cst = arith.constant dense<0.000000e+00> : vector<16x32xf32>
    %4 = tpu.matmul %1, %3, %cst {dimension_numbers = #tpu.dot_dimension_numbers<[1], [0], [0], [1], [0, 0, 1, 1], [], []>} : vector<16x32xbf16>, vector<32x32xbf16>, vector<16x32xf32> -> vector<16x32xf32>
    %c0_3 = arith.constant 0 : index
    %c0_4 = arith.constant 0 : index
    %5 = vector.load %arg3[%c0_3, %c0_4] : memref<1x32xf32, #tpu.memory_space<vmem>>, vector<1x32xf32>
    %6 = vector.broadcast %5 : vector<1x32xf32> to vector<16x32xf32>
    %7 = arith.addf %4, %6 : vector<16x32xf32>
    %8 = math.tanh %7 : vector<16x32xf32>
    %9 = vector.shape_cast %8 : vector<16x32xf32> to vector<2x8x32xf32>
    %c0_5 = arith.constant 0 : index
    %c0_6 = arith.constant 0 : index
    %10 = vector.load %arg4[%c0_5, %c0_6] : memref<1x32xf32, #tpu.memory_space<vmem>>, vector<1x32xf32>
    %11 = vector.shape_cast %10 : vector<1x32xf32> to vector<1x1x32xf32>
    %12 = vector.broadcast %11 : vector<1x1x32xf32> to vector<2x8x32xf32>
    %13 = arith.mulf %9, %12 : vector<2x8x32xf32>
    %cst_7 = arith.constant dense<0.000000e+00> : vector<2x8xf32>
    %14 = vector.multi_reduction <add>, %13, %cst_7 [2] : vector<2x8x32xf32> to vector<2x8xf32>
    %c0_8 = arith.constant 0 : index
    %c0_9 = arith.constant 0 : index
    %15 = vector.load %arg5[%c0_8, %c0_9] : memref<2x8xf32, #tpu.memory_space<vmem>>, vector<2x8xf32>
    %cst_10 = arith.constant 0.000000e+00 : f32
    %16 = vector.broadcast %cst_10 : f32 to vector<2x8xf32>
    %17 = arith.cmpf ogt, %15, %16 : vector<2x8xf32>
    %18 = arith.extui %17 : vector<2x8xi1> to vector<2x8xi32>
    %19 = arith.sitofp %18 : vector<2x8xi32> to vector<2x8xf32>
    %cst_11 = arith.constant 0.000000e+00 : f32
    %20 = vector.broadcast %cst_11 : f32 to vector<2x8xf32>
    %21 = arith.cmpf ogt, %15, %20 : vector<2x8xf32>
    %cst_12 = arith.constant -1.000000e+30 : f32
    %22 = vector.broadcast %cst_12 : f32 to vector<2x8xf32>
    %23 = arith.select %21, %14, %22 : vector<2x8xi1>, vector<2x8xf32>
    %cst_13 = arith.constant dense<0xFF800000> : vector<2xf32>
    %24 = vector.multi_reduction <maximumf>, %23, %cst_13 [1] : vector<2x8xf32> to vector<2xf32>
    %25 = vector.shape_cast %24 : vector<2xf32> to vector<2x1xf32>
    %26 = vector.broadcast %25 : vector<2x1xf32> to vector<2x8xf32>
    %27 = arith.subf %23, %26 : vector<2x8xf32>
    %28 = math.exp %27 : vector<2x8xf32>
    %29 = arith.mulf %28, %19 : vector<2x8xf32>
    %cst_14 = arith.constant dense<0.000000e+00> : vector<2xf32>
    %30 = vector.multi_reduction <add>, %29, %cst_14 [1] : vector<2x8xf32> to vector<2xf32>
    %31 = vector.shape_cast %30 : vector<2xf32> to vector<2x1xf32>
    %cst_15 = arith.constant 1.000000e-30 : f32
    %32 = vector.broadcast %cst_15 : f32 to vector<2x1xf32>
    %33 = arith.maximumf %31, %32 : vector<2x1xf32>
    %34 = tpu.reciprocal %33 {approx = true} : vector<2x1xf32> -> vector<2x1xf32>
    %35 = arith.mulf %33, %34 : vector<2x1xf32>
    %cst_16 = arith.constant 2.000000e+00 : f32
    %36 = vector.broadcast %cst_16 : f32 to vector<2x1xf32>
    %37 = arith.subf %36, %35 : vector<2x1xf32>
    %38 = arith.mulf %34, %37 : vector<2x1xf32>
    %39 = vector.broadcast %38 : vector<2x1xf32> to vector<2x8xf32>
    %40 = arith.mulf %29, %39 : vector<2x8xf32>
    %c0_17 = arith.constant 0 : index
    %c0_18 = arith.constant 0 : index
    %41 = vector.load %arg6[%c0_17, %c0_18] : memref<2x8xf32, #tpu.memory_space<vmem>>, vector<2x8xf32>
    tpu.vector_store %arg6[%c0_17, %c0_18], %40 {strides = array<i32>} : memref<2x8xf32, #tpu.memory_space<vmem>>, vector<2x8xf32>,
    return
  }
  func.func @transform_0(%arg0: i32) -> (i32, i32) {
    %c0_i32 = arith.constant 0 : i32
    %c0_i32_0 = arith.constant 0 : i32
    return %arg0, %c0_i32 : i32, i32
  }
  func.func @transform_1(%arg0: i32) -> (i32, i32) {
    %c0_i32 = arith.constant 0 : i32
    %c0_i32_0 = arith.constant 0 : i32
    %c0_i32_1 = arith.constant 0 : i32
    return %c0_i32, %c0_i32_0 : i32, i32
  }
  func.func @transform_2(%arg0: i32) -> (i32, i32) {
    %c0_i32 = arith.constant 0 : i32
    %c0_i32_0 = arith.constant 0 : i32
    %c0_i32_1 = arith.constant 0 : i32
    return %c0_i32, %c0_i32_0 : i32, i32
  }
  func.func @transform_3(%arg0: i32) -> (i32, i32) {
    %c0_i32 = arith.constant 0 : i32
    %c0_i32_0 = arith.constant 0 : i32
    %c0_i32_1 = arith.constant 0 : i32
    return %c0_i32, %c0_i32_0 : i32, i32
  }
  func.func @transform_4(%arg0: i32) -> (i32, i32) {
    %c0_i32 = arith.constant 0 : i32
    %c0_i32_0 = arith.constant 0 : i32
    return %arg0, %c0_i32 : i32, i32
  }
  func.func @transform_5(%arg0: i32) -> (i32, i32) {
    %c0_i32 = arith.constant 0 : i32
    %c0_i32_0 = arith.constant 0 : i32
    return %arg0, %c0_i32 : i32, i32
  }
}

</mosaic_0001>

<llo_original>
// kernel: tpu_custom_call.1
$region0: #{tpu_custom_call.1}
  #allocation0 [shape = 'u32[]', space=smem, size = 0x4, offset = 0x4, fixed_abs, tag = 'smem constant byte address 0x4 - core index']
  #allocation1 [shape = 'u32[144,128]{1,0:T(1,128)}', space=vmem, size = 0x12000, scoped, tag = 'internal scratch']
  %s0 = inlined_call_operand.hbm [shape: f32[16,32], index: 0, kind: input, shape index: {}]
  %s1 = inlined_call_operand.hbm [shape: f32[32,32], index: 1, kind: input, shape index: {}]
  %s2 = inlined_call_operand.vmem [shape: f32[1,32], index: 2, kind: input, shape index: {}]
  %s3 = inlined_call_operand.vmem [shape: f32[1,32], index: 3, kind: input, shape index: {}]
  %s4 = inlined_call_operand.vmem [shape: f32[2,8], index: 4, kind: input, shape index: {}]
  %s5 = inlined_call_operand.hbm [shape: f32[2,8], index: 5, kind: output, shape index: {}]
  %s6 = sld [smem:[#allocation0]]
  $region38: #{tpu_custom_call.1} parent=0
    _
  %s8 = ssub.s32 1, %s6
  %s9 = scalar_select 0, %s8, %s6
  $region1: #{tpu_custom_call.1} parent=0
    #allocation2 [shape = 'u8[8192]{0}', space=vmem, size = 0x2000, scoped, tag = 'input window, operand 0, single buffered']
    #allocation3 [shape = 's32[1]{0}', space=sflag, size = 0x4, scoped, tag = 'scoped memory for tpu_custom_call.1']
    #allocation4 [shape = 's32[1]{0}', space=sflag, size = 0x4, scoped, tag = 'scoped memory for tpu_custom_call.1']
    #allocation5 [shape = 'u8[16384]{0}', space=vmem, size = 0x4000, scoped, tag = 'input window, operand 1, single buffered']
    #allocation6 [shape = 's32[1]{0}', space=sflag, size = 0x4, scoped, tag = 'scoped memory for tpu_custom_call.1']
    #allocation7 [shape = 'u8[1024]{0}', space=vmem, size = 0x400, scoped, tag = 'output window, operand 0, single buffered']
    %10 = vsyncpa [#allocation3], 0
    %11 = vsyncpa [#allocation6], 0
    %12 = vsyncpa [#allocation4], 0
    // Predicated region
    $region2: #{tpu_custom_call.1} parent=1 // pred_check
      _
    $region3: #{tpu_custom_call.1} parent=1 // pred_check_branch
      %14 = sbr.rel (0) target = $region5
    $region4: #{tpu_custom_call.1} parent=1 // pred_region
      %s16 = ssub.s32 256, 256
      %17 = vsyncadd [#allocation3], %s16
      %s18 = sshll.u32 [#allocation2], 4
      %s19 = int_to_ptr.vmem [resolvable:$true] %s18
      %24 = dma.hbm_to_vmem [thread:$0]  %s0, 256, %s19, [#allocation3], 128, 128, 8
    $region5: #{tpu_custom_call.1} parent=1 // pred_fallthru
      _
    // Predicated region
    $region6: #{tpu_custom_call.1} parent=1 // pred_check
      _
    $region7: #{tpu_custom_call.1} parent=1 // pred_check_branch
      %26 = sbr.rel (0) target = $region9
    $region8: #{tpu_custom_call.1} parent=1 // pred_region
      %s28 = ssub.s32 512, 512
      %29 = vsyncadd [#allocation6], %s28
      %s30 = sshll.u32 [#allocation5], 4
      %s31 = int_to_ptr.vmem [resolvable:$true] %s30
      %36 = dma.hbm_to_vmem [thread:$0]  %s1, 512, %s31, [#allocation6], 128, 128, 8
    $region9: #{tpu_custom_call.1} parent=1 // pred_fallthru
      _
    // Predicated region
    $region10: #{tpu_custom_call.1} parent=1 // pred_check
      _
    $region11: #{tpu_custom_call.1} parent=1 // pred_check_branch
      %38 = sbr.rel (0) target = $region13
    $region12: #{tpu_custom_call.1} parent=1 // pred_region
      _
    $region13: #{tpu_custom_call.1} parent=1 // pred_fallthru
      _
    // Predicated region
    $region14: #{tpu_custom_call.1} parent=1 // pred_check
      _
    $region15: #{tpu_custom_call.1} parent=1 // pred_check_branch
      %40 = sbr.rel (0) target = $region17
    $region16: #{tpu_custom_call.1} parent=1 // pred_region
      _
    $region17: #{tpu_custom_call.1} parent=1 // pred_fallthru
      _
    // Predicated region
    $region18: #{tpu_custom_call.1} parent=1 // pred_check
      _
    $region19: #{tpu_custom_call.1} parent=1 // pred_check_branch
      %42 = sbr.rel (0) target = $region21
    $region20: #{tpu_custom_call.1} parent=1 // pred_region
      _
    $region21: #{tpu_custom_call.1} parent=1 // pred_fallthru
      _
    // Predicated region
    $region22: #{tpu_custom_call.1} parent=1 // pred_check
      _
    $region23: #{tpu_custom_call.1} parent=1 // pred_check_branch
      %44 = sbr.rel (0) target = $region25
    $region24: #{tpu_custom_call.1} parent=1 // pred_region
      %45 = dma.done [#allocation3], 256
    $region25: #{tpu_custom_call.1} parent=1 // pred_fallthru
      _
    // Predicated region
    $region26: #{tpu_custom_call.1} parent=1 // pred_check
      _
    $region27: #{tpu_custom_call.1} parent=1 // pred_check_branch
      %47 = sbr.rel (0) target = $region29
    $region28: #{tpu_custom_call.1} parent=1 // pred_region
      %48 = dma.done [#allocation6], 512
    $region29: #{tpu_custom_call.1} parent=1 // pred_fallthru
      _
    %v50 = vld [vmem:[#allocation2] sm:$0xff]
    %v51 = vld [vmem:[#allocation2 + $0x8] sm:$0xff]
    %v52 = vpack.c.bf16 %v51, %v50
    %v53 = vld [vmem:[#allocation5] sm:$0xff]
    %v54 = vld [vmem:[#allocation5 + $0x8] sm:$0xff]
    %v55 = vld [vmem:[#allocation5 + $0x10] sm:$0xff]
    %v56 = vld [vmem:[#allocation5 + $0x18] sm:$0xff]
    %v57 = vpack.c.bf16 %v54, %v53
    %v58 = vpack.c.bf16 %v56, %v55
    %v59 = vld [vmem:[%s2] sm:$0x1]
    %v61 = vlaneseq
    %v62 = vshrl.u32 %v61, 7
    %v63 = vsub.s32 0, %v62
    %v64 = vrot.slane %v59, %v63
    %vm66 = vcmask 261120
    %v68 = vsel %vm66, %v52, 0
    %70 = vmatprep.subr.bf16.mxu0 0
    %71 = vmatpush1.bf16.msra.mxu0 0
    %72 = vmatprep.subr.bf16.mxu0 0
    %73 = vmatpush1.bf16.msra.mxu0 0
    %74 = vmatprep.subr.bf16.mxu0 0
    %75 = vmatpush1.bf16.msra.mxu0 0
    %76 = vmatprep.subr.bf16.mxu0 0
    %77 = vmatpush1.bf16.msra.mxu0 0
    %78 = vmatprep.subr.bf16.mxu0 0
    %79 = vmatpush1.bf16.msra.mxu0 0
    %80 = vmatprep.subr.bf16.mxu0 0
    %81 = vmatpush1.bf16.msra.mxu0 0
    %82 = vmatprep.subr.bf16.mxu0 0
    %83 = vmatpush1.bf16.msra.mxu0 %v58
    %84 = vmatprep.subr.bf16.mxu0 0
    %85 = vmatpush1.bf16.msra.mxu0 %v57
    %86 = vmatprep.subr.bf16.mxu0 0
    %87 = vmatpush2.bf16.msra.mxu0 0
    %88 = vmatprep.subr.bf16.mxu0 0
    %89 = vmatpush2.bf16.msra.mxu0 0
    %90 = vmatprep.subr.bf16.mxu0 0
    %91 = vmatpush2.bf16.msra.mxu0 0
    %92 = vmatprep.subr.bf16.mxu0 0
    %93 = vmatpush2.bf16.msra.mxu0 0
    %94 = vmatprep.subr.bf16.mxu0 0
    %95 = vmatpush2.bf16.msra.mxu0 0
    %96 = vmatprep.subr.bf16.mxu0 0
    %97 = vmatpush2.bf16.msra.mxu0 0
    %98 = vmatprep.subr.bf16.mxu0 0
    %99 = vmatpush2.bf16.msra.mxu0 0
    %100 = vmatprep.subr.bf16.mxu0 0
    %101 = vmatpush2.bf16.msra.mxu0 0
    %102 = vmatprep.mubr.bf16.mxu0 0
    %103 = vmatmul.mubr.bf16.gmra.mxu0 %v68
    %v104 = vpop.f32.mrf.mxu0
    %v105 = vadd.f32 %v64, %v104
    %v106 = vpop.f32.mrf.mxu0
    %v107 = vpop.f32.mrf.mxu0
    %v108 = vadd.f32 %v64, %v107
    %v109 = vpop.f32.mrf.mxu0
    %110 = vdwg.mxu0
    %v111 = vtanh.pop %v105
    %v112 = vtanh.pop %v108
    %v113 = vld [vmem:[%s3] sm:$0x1]
    %v115 = vlaneseq
    %v116 = vshrl.u32 %v115, 7
    %v117 = vsub.s32 0, %v116
    %v118 = vrot.slane %v113, %v117
    %v120 = vmul.f32 %v111, %v118
    %v121 = vmul.f32 %v112, %v118
    %v122 = vsel %vm66, %v120, 0.0
    %123 = vadd.xlane.f32.xlu0 %v122
    %v124 = vpop.xlane.xlu0 %123
    %v125 = vsel %vm66, %v121, 0.0
    %126 = vadd.xlane.f32.xlu0 %v125
    %v127 = vpop.xlane.xlu0 %126
    %v128 = vld [vmem:[%s4] sm:$0x3]
    %vm129 = vcmp.gt.f32.partialorder %v128, 0.0
    %v130 = vsel %vm129, 1, 0
    %v131 = vcvt.s32.f32 %v130
    %v134 = vlaneseq
    %v135 = vand.u32 %v134, 127
    %v136 = vlaneseq
    %v137 = vshrl.u32 %v136, 7
    %v138 = vsub.s32 %v135, %v137
    %v139 = vrot.slane %v124, %v138
    %v140 = vlaneseq
    %v141 = vshrl.u32 %v140, 7
    %v142 = vsub.s32 %v135, %v141
    %v143 = vrot.slane %v127, %v142
    %vm144 = vcmask 1041409
    %v145 = vsel %vm144, %v143, %v139
    %v147 = vsel %vm129, %v145, -1e+30
    %vm148 = vcmask 58368
    %v149 = vsel %vm148, %v147, -inf
    %150 = vmax.xlane.f32.xlu0 %v149
    %v151 = vpop.xlane.xlu0 %150
    %v152 = vsub.f32 %v147, %v151
    %v153 = vmul.f32 %v152, 1.442695
    %v154 = vpow.pop %v153
    %v155 = vmul.f32 %v154, %v131
    %v156 = vsel %vm148, %v155, 0.0
    %157 = vadd.xlane.f32.xlu0 %v156
    %v158 = vpop.xlane.xlu0 %157
    %v159 = vmax.f32 %v158, 1e-30
    %v160 = vrcp.pop %v159
    %v161 = vmul.f32 %v159, %v160
    %v162 = vsub.f32 2.0, %v161
    %v163 = vmul.f32 %v160, %v162
    %v164 = vmul.f32 %v155, %v163
    %165 = vst.msk [vmem:[#allocation7] sm:$0x3] %vm148, %v164
    // Predicated region
    $region30: #{tpu_custom_call.1} parent=1 // pred_check
      _
    $region31: #{tpu_custom_call.1} parent=1 // pred_check_branch
      %167 = sbr.rel (0) target = $region33
    $region32: #{tpu_custom_call.1} parent=1 // pred_region
      %s169 = ssub.s32 32, 32
      %170 = vsyncadd [#allocation4], %s169
      %s172 = sshll.u32 [#allocation7], 4
      %s173 = int_to_ptr.vmem [resolvable:$true] %s172
      %175 = dma.vmem_to_hbm [thread:$0]  %s173, 32, %s5, [#allocation4]
    $region33: #{tpu_custom_call.1} parent=1 // pred_fallthru
      _
    // Predicated region
    $region34: #{tpu_custom_call.1} parent=1 // pred_check
      _
    $region35: #{tpu_custom_call.1} parent=1 // pred_check_branch
      %177 = sbr.rel (0) target = $region37
    $region36: #{tpu_custom_call.1} parent=1 // pred_region
      %178 = dma.done [#allocation4], 32
    $region37: #{tpu_custom_call.1} parent=1 // pred_fallthru
      _
    %179 = vsyncpa [#allocation3], 1
    %180 = vsyncpa [#allocation6], 1
    %181 = vsyncpa [#allocation4], 1

// kernel: tpu_custom_call.1
$region0: #{tpu_custom_call.1}
  #allocation0 [shape = 'u32[]', space=smem, size = 0x4, offset = 0x4, fixed_abs, tag = 'smem constant byte address 0x4 - core index']
  #allocation1 [shape = 'u32[144,128]{1,0:T(1,128)}', space=vmem, size = 0x12000, scoped, tag = 'internal scratch']
  %s0 = inlined_call_operand.hbm [shape: f32[16,32], index: 0, kind: input, shape index: {}]
  %s1 = inlined_call_operand.hbm [shape: f32[32,32], index: 1, kind: input, shape index: {}]
  %s2 = inlined_call_operand.vmem [shape: f32[1,32], index: 2, kind: input, shape index: {}]
  %s3 = inlined_call_operand.vmem [shape: f32[1,32], index: 3, kind: input, shape index: {}]
  %s4 = inlined_call_operand.vmem [shape: f32[2,8], index: 4, kind: input, shape index: {}]
  %s5 = inlined_call_operand.hbm [shape: f32[2,8], index: 5, kind: output, shape index: {}]
  %s6 = sld [smem:[#allocation0]]
  $region38: #{tpu_custom_call.1} parent=0
    _
  %s8 = ssub.s32 1, %s6
  %s9 = scalar_select 0, %s8, %s6
  $region1: #{tpu_custom_call.1} parent=0
    #allocation2 [shape = 'u8[8192]{0}', space=vmem, size = 0x2000, scoped, tag = 'input window, operand 0, single buffered']
    #allocation3 [shape = 's32[1]{0}', space=sflag, size = 0x4, scoped, tag = 'scoped memory for tpu_custom_call.1']
    #allocation4 [shape = 's32[1]{0}', space=sflag, size = 0x4, scoped, tag = 'scoped memory for tpu_custom_call.1']
    #allocation5 [shape = 'u8[16384]{0}', space=vmem, size = 0x4000, scoped, tag = 'input window, operand 1, single buffered']
    #allocation6 [shape = 's32[1]{0}', space=sflag, size = 0x4, scoped, tag = 'scoped memory for tpu_custom_call.1']
    #allocation7 [shape = 'u8[1024]{0}', space=vmem, size = 0x400, scoped, tag = 'output window, operand 0, single buffered']
    %10 = vsyncpa [#allocation3], 0
    %11 = vsyncpa [#allocation6], 0
    %12 = vsyncpa [#allocation4], 0
    // Predicated region
    $region2: #{tpu_custom_call.1} parent=1 // pred_check
      _
    $region3: #{tpu_custom_call.1} parent=1 // pred_check_branch
      %14 = sbr.rel (0) target = $region5
    $region4: #{tpu_custom_call.1} parent=1 // pred_region
      %s16 = ssub.s32 256, 256
      %17 = vsyncadd [#allocation3], %s16
      %s18 = sshll.u32 [#allocation2], 4
      %s19 = int_to_ptr.vmem [resolvable:$true] %s18
      %24 = dma.hbm_to_vmem [thread:$0]  %s0, 256, %s19, [#allocation3], 128, 128, 8
    $region5: #{tpu_custom_call.1} parent=1 // pred_fallthru
      _
    // Predicated region
    $region6: #{tpu_custom_call.1} parent=1 // pred_check
      _
    $region7: #{tpu_custom_call.1} parent=1 // pred_check_branch
      %26 = sbr.rel (0) target = $region9
    $region8: #{tpu_custom_call.1} parent=1 // pred_region
      %s28 = ssub.s32 512, 512
      %29 = vsyncadd [#allocation6], %s28
      %s30 = sshll.u32 [#allocation5], 4
      %s31 = int_to_ptr.vmem [resolvable:$true] %s30
      %36 = dma.hbm_to_vmem [thread:$0]  %s1, 512, %s31, [#allocation6], 128, 128, 8
    $region9: #{tpu_custom_call.1} parent=1 // pred_fallthru
      _
    // Predicated region
    $region10: #{tpu_custom_call.1} parent=1 // pred_check
      _
    $region11: #{tpu_custom_call.1} parent=1 // pred_check_branch
      %38 = sbr.rel (0) target = $region13
    $region12: #{tpu_custom_call.1} parent=1 // pred_region
      _
    $region13: #{tpu_custom_call.1} parent=1 // pred_fallthru
      _
    // Predicated region
    $region14: #{tpu_custom_call.1} parent=1 // pred_check
      _
    $region15: #{tpu_custom_call.1} parent=1 // pred_check_branch
      %40 = sbr.rel (0) target = $region17
    $region16: #{tpu_custom_call.1} parent=1 // pred_region
      _
    $region17: #{tpu_custom_call.1} parent=1 // pred_fallthru
      _
    // Predicated region
    $region18: #{tpu_custom_call.1} parent=1 // pred_check
      _
    $region19: #{tpu_custom_call.1} parent=1 // pred_check_branch
      %42 = sbr.rel (0) target = $region21
    $region20: #{tpu_custom_call.1} parent=1 // pred_region
      _
    $region21: #{tpu_custom_call.1} parent=1 // pred_fallthru
      _
    // Predicated region
    $region22: #{tpu_custom_call.1} parent=1 // pred_check
      _
    $region23: #{tpu_custom_call.1} parent=1 // pred_check_branch
      %44 = sbr.rel (0) target = $region25
    $region24: #{tpu_custom_call.1} parent=1 // pred_region
      %45 = dma.done [#allocation3], 256
    $region25: #{tpu_custom_call.1} parent=1 // pred_fallthru
      _
    // Predicated region
    $region26: #{tpu_custom_call.1} parent=1 // pred_check
      _
    $region27: #{tpu_custom_call.1} parent=1 // pred_check_branch
      %47 = sbr.rel (0) target = $region29
    $region28: #{tpu_custom_call.1} parent=1 // pred_region
      %48 = dma.done [#allocation6], 512
    $region29: #{tpu_custom_call.1} parent=1 // pred_fallthru
      _
    %v50 = vld [vmem:[#allocation2] sm:$0xff]
    %v51 = vld [vmem:[#allocation2 + $0x8] sm:$0xff]
    %v52 = vpack.c.bf16 %v51, %v50
    %v53 = vld [vmem:[#allocation5] sm:$0xff]
    %v54 = vld [vmem:[#allocation5 + $0x8] sm:$0xff]
    %v55 = vld [vmem:[#allocation5 + $0x10] sm:$0xff]
    %v56 = vld [vmem:[#allocation5 + $0x18] sm:$0xff]
    %v57 = vpack.c.bf16 %v54, %v53
    %v58 = vpack.c.bf16 %v56, %v55
    %v59 = vld [vmem:[%s2] sm:$0x1]
    %v61 = vlaneseq
    %v62 = vshrl.u32 %v61, 7
    %v63 = vsub.s32 0, %v62
    %v64 = vrot.slane %v59, %v63
    %vm66 = vcmask 261120
    %v68 = vsel %vm66, %v52, 0
    %70 = vmatprep.subr.bf16.mxu0 0
    %71 = vmatpush1.bf16.msra.mxu0 0
    %72 = vmatprep.subr.bf16.mxu0 0
    %73 = vmatpush1.bf16.msra.mxu0 0
    %74 = vmatprep.subr.bf16.mxu0 0
    %75 = vmatpush1.bf16.msra.mxu0 0
    %76 = vmatprep.subr.bf16.mxu0 0
    %77 = vmatpush1.bf16.msra.mxu0 0
    %78 = vmatprep.subr.bf16.mxu0 0
    %79 = vmatpush1.bf16.msra.mxu0 0
    %80 = vmatprep.subr.bf16.mxu0 0
    %81 = vmatpush1.bf16.msra.mxu0 0
    %82 = vmatprep.subr.bf16.mxu0 0
    %83 = vmatpush1.bf16.msra.mxu0 %v58
    %84 = vmatprep.subr.bf16.mxu0 0
    %85 = vmatpush1.bf16.msra.mxu0 %v57
    %86 = vmatprep.subr.bf16.mxu0 0
    %87 = vmatpush2.bf16.msra.mxu0 0
    %88 = vmatprep.subr.bf16.mxu0 0
    %89 = vmatpush2.bf16.msra.mxu0 0
    %90 = vmatprep.subr.bf16.mxu0 0
    %91 = vmatpush2.bf16.msra.mxu0 0
    %92 = vmatprep.subr.bf16.mxu0 0
    %93 = vmatpush2.bf16.msra.mxu0 0
    %94 = vmatprep.subr.bf16.mxu0 0
    %95 = vmatpush2.bf16.msra.mxu0 0
    %96 = vmatprep.subr.bf16.mxu0 0
    %97 = vmatpush2.bf16.msra.mxu0 0
    %98 = vmatprep.subr.bf16.mxu0 0
    %99 = vmatpush2.bf16.msra.mxu0 0
    %100 = vmatprep.subr.bf16.mxu0 0
    %101 = vmatpush2.bf16.msra.mxu0 0
    %102 = vmatprep.mubr.bf16.mxu0 0
    %103 = vmatmul.mubr.bf16.gmra.mxu0 %v68
    %v104 = vpop.f32.mrf.mxu0
    %v105 = vadd.f32 %v64, %v104
    %v106 = vpop.f32.mrf.mxu0
    %v107 = vpop.f32.mrf.mxu0
    %v108 = vadd.f32 %v64, %v107
    %v109 = vpop.f32.mrf.mxu0
    %110 = vdwg.mxu0
    %v111 = vtanh.pop %v105
    %v112 = vtanh.pop %v108
    %v113 = vld [vmem:[%s3] sm:$0x1]
    %v115 = vlaneseq
    %v116 = vshrl.u32 %v115, 7
    %v117 = vsub.s32 0, %v116
    %v118 = vrot.slane %v113, %v117
    %v120 = vmul.f32 %v111, %v118
    %v121 = vmul.f32 %v112, %v118
    %v122 = vsel %vm66, %v120, 0.0
    %123 = vadd.xlane.f32.xlu0 %v122
    %v124 = vpop.xlane.xlu0 %123
    %v125 = vsel %vm66, %v121, 0.0
    %126 = vadd.xlane.f32.xlu0 %v125
    %v127 = vpop.xlane.xlu0 %126
    %v128 = vld [vmem:[%s4] sm:$0x3]
    %vm129 = vcmp.gt.f32.partialorder %v128, 0.0
    %v130 = vsel %vm129, 1, 0
    %v131 = vcvt.s32.f32 %v130
    %v134 = vlaneseq
    %v135 = vand.u32 %v134, 127
    %v136 = vlaneseq
    %v137 = vshrl.u32 %v136, 7
    %v138 = vsub.s32 %v135, %v137
    %v139 = vrot.slane %v124, %v138
    %v140 = vlaneseq
    %v141 = vshrl.u32 %v140, 7
    %v142 = vsub.s32 %v135, %v141
    %v143 = vrot.slane %v127, %v142
    %vm144 = vcmask 1041409
    %v145 = vsel %vm144, %v143, %v139
    %v147 = vsel %vm129, %v145, -1e+30
    %vm148 = vcmask 58368
    %v149 = vsel %vm148, %v147, -inf
    %150 = vmax.xlane.f32.xlu0 %v149
    %v151 = vpop.xlane.xlu0 %150
    %v152 = vsub.f32 %v147, %v151
    %v153 = vmul.f32 %v152, 1.442695
    %v154 = vpow.pop %v153
    %v155 = vmul.f32 %v154, %v131
    %v156 = vsel %vm148, %v155, 0.0
    %157 = vadd.xlane.f32.xlu0 %v156
    %v158 = vpop.xlane.xlu0 %157
    %v159 = vmax.f32 %v158, 1e-30
    %v160 = vrcp.pop %v159
    %v161 = vmul.f32 %v159, %v160
    %v162 = vsub.f32 2.0, %v161
    %v163 = vmul.f32 %v160, %v162
    %v164 = vmul.f32 %v155, %v163
    %165 = vst.msk [vmem:[#allocation7] sm:$0x3] %vm148, %v164
    // Predicated region
    $region30: #{tpu_custom_call.1} parent=1 // pred_check
      _
    $region31: #{tpu_custom_call.1} parent=1 // pred_check_branch
      %167 = sbr.rel (0) target = $region33
    $region32: #{tpu_custom_call.1} parent=1 // pred_region
      %s169 = ssub.s32 32, 32
      %170 = vsyncadd [#allocation4], %s169
      %s172 = sshll.u32 [#allocation7], 4
      %s173 = int_to_ptr.vmem [resolvable:$true] %s172
      %175 = dma.vmem_to_hbm [thread:$0]  %s173, 32, %s5, [#allocation4]
    $region33: #{tpu_custom_call.1} parent=1 // pred_fallthru
      _
    // Predicated region
    $region34: #{tpu_custom_call.1} parent=1 // pred_check
      _
    $region35: #{tpu_custom_call.1} parent=1 // pred_check_branch
      %177 = sbr.rel (0) target = $region37
    $region36: #{tpu_custom_call.1} parent=1 // pred_region
      %178 = dma.done [#allocation4], 32
    $region37: #{tpu_custom_call.1} parent=1 // pred_fallthru
      _
    %179 = vsyncpa [#allocation3], 1
    %180 = vsyncpa [#allocation6], 1
    %181 = vsyncpa [#allocation4], 1

</llo_original>
